<compile_context>
chip_gen: v7x
topology: tpu7x:2x2x1
jax: 0.10.0
libtpu: 0.0.40
codegen_flags: <defaults>
</compile_context>

<pallas_src>
import functools
import math

import jax
import jax.numpy as jnp
import numpy as np
from jax import lax
from jax.experimental import pallas as pl
from jax.experimental.pallas import tpu as pltpu

NUM_HEADS = 4      # nn.MultiheadAttention(embed_dim=output_feat*7, num_heads=4)
TARGET_ROWS = 256  # per-grid-step row target: fills v6e/v7x 256-high MXU (>=128 for v5e)


def _gnn_kernel(Bblk, C, hd_pad, x_ref, wqk_ref, bqk_ref, wg_ref, bg_ref, o_ref):
    H = NUM_HEADS
    Dq = H * hd_pad
    rows = Bblk * C

    x = x_ref[...]  # (rows, D): Bblk batches stacked on the sublane axis

    # Fused Q/K projection: one (rows, D) @ (D, 2*H*hd_pad) matmul. 1/sqrt(hd) is folded into
    # the Q half of the weight/bias host-side; head padding columns are zero.
    qk = jnp.dot(x, wqk_ref[...], preferred_element_type=jnp.float32) + bqk_ref[...]

    # Head-major stacks (H, rows, hd_pad): the 4 per-head score matmuls become one batched
    # dot_general (single MXU stream, one loop for the scheduler).
    q = jnp.stack([qk[:, h * hd_pad:(h + 1) * hd_pad] for h in range(H)], axis=0)
    k = jnp.stack([qk[:, Dq + h * hd_pad:Dq + (h + 1) * hd_pad] for h in range(H)], axis=0)

    # Batched Q.K^T contracting the last dims of both operands (no explicit transpose of k).
    s = jnp.einsum("hqd,hkd->hqk", q, k,
                   preferred_element_type=jnp.float32)        # (H, rows, rows)

    if Bblk > 1:
        # Block-diagonal mask for the Bblk independent batches sharing this score block.
        row = lax.broadcasted_iota(jnp.int32, (rows, rows), 0)
        col = lax.broadcasted_iota(jnp.int32, (rows, rows), 1)
        if (C & (C - 1)) == 0:
            same = (row ^ col) < C                 # power-of-two C: one xor + one compare
        else:
            same = (row // C) == (col // C)
        s = jnp.where(same[None, :, :], s, jnp.float32(-1e30))  # f32 exp -> exactly 0

    # Single softmax pass over all heads (one max / exp / sum / reciprocal sweep).
    s = s - jnp.max(s, axis=-1, keepdims=True)
    e = jnp.exp(s)
    p = e * pl.reciprocal(jnp.sum(e, axis=-1, keepdims=True), approx=True)

    # Head average (3 VPU adds): this is `b` from `a, b = self.MHA(x, x, x)`.
    attn = p[0]
    for h in range(1, H):
        attn = attn + p[h]
    attn = attn * (1.0 / H)

    # x = bmm(b, x) (attn is block-diagonal across batches), then x @ W_gnn + B_gnn.
    y = jnp.dot(attn, x, preferred_element_type=jnp.float32)           # (rows, D)
    out = jnp.dot(y, wg_ref[...], preferred_element_type=jnp.float32)  # (rows, 128) lane-dense
    o_ref[...] = out + bg_ref[...]                                      # single unmasked store


def gnn_forward(x, params):
    """x: (B, T, C, F) float32. Returns (B, T, C, D//T)."""
    B, T, C, Ff = x.shape
    D = T * Ff
    assert D % NUM_HEADS == 0, "embed_dim must be divisible by num_heads"
    hd = D // NUM_HEADS
    hd_pad = ((hd + 7) // 8) * 8                  # 14 -> 16: aligned head slices
    Dq_pad = NUM_HEADS * hd_pad                   # 64
    D_out_pad = ((D + 127) // 128) * 128          # 56 -> 128: unmasked lane-dense output
    scale = 1.0 / math.sqrt(hd)                   # keep 1/sqrt(14), NOT 1/sqrt(16)

    # TODO(synk): the (B,T,C,F)->(B*C,T*F) reshuffle (and the inverse on the output) stays in
    # the wrapper; with F=7 last-dim the in-kernel layout would be lane-sparse, so XLA handles
    # the relayout more cheaply outside the kernel.
    xr = jnp.transpose(x, (0, 2, 1, 3)).reshape(B * C, D)

    # Batch-block size: fill the MXU rows when B is large while keeping (H, rows, rows)
    # temporaries tiny vs. v7x's 64 MiB VMEM.
    Bblk = max(1, min(B, TARGET_ROWS // max(C, 1)))
    while (Bblk * C) % 8 != 0:                    # sublane-divisible block height
        Bblk += 1
    n_blocks = (B + Bblk - 1) // Bblk
    B_pad = n_blocks * Bblk
    if B_pad > B:                                 # zero-pad batches; stripped after the call
        xr = jnp.pad(xr, ((0, (B_pad - B) * C), (0, 0)))
    rows_blk = Bblk * C

    # F.linear convention: q = x @ Wq^T + bq, with in_proj_weight rows [q; k; v]
    wq = params["in_proj_w"][:D].T * scale            # (D, D), scale folded in
    bq = params["in_proj_b"][:D] * scale
    wk = params["in_proj_w"][D:2 * D].T               # (D, D)
    bk = params["in_proj_b"][D:2 * D]

    def pad_heads_w(w):  # (D, H*hd) -> (D, H*hd_pad), zero-pad each head's columns
        w = w.reshape(D, NUM_HEADS, hd)
        w = jnp.pad(w, ((0, 0), (0, 0), (0, hd_pad - hd)))
        return w.reshape(D, Dq_pad)

    def pad_heads_b(b_):
        b_ = b_.reshape(NUM_HEADS, hd)
        b_ = jnp.pad(b_, ((0, 0), (0, hd_pad - hd)))
        return b_.reshape(Dq_pad)

    # Fused + padded Q/K projection weight: (D, 2*Dq_pad) = (56, 128)
    wqk = jnp.concatenate([pad_heads_w(wq), pad_heads_w(wk)], axis=1)
    bqk = jnp.concatenate([pad_heads_b(bq), pad_heads_b(bk)]).reshape(1, 2 * Dq_pad)

    # Lane-padded GNN weight/bias: output block is a full 128-lane slab
    wg = jnp.pad(params["W_gnn"], ((0, 0), (0, D_out_pad - D)))       # (D, 128)
    bg = jnp.pad(params["B_gnn"], (0, D_out_pad - D)).reshape(1, D_out_pad)

    kernel = functools.partial(_gnn_kernel, Bblk, C, hd_pad)
    out = pl.pallas_call(
        kernel,
        out_shape=jax.ShapeDtypeStruct((B_pad * C, D_out_pad), jnp.float32),
        grid=(n_blocks,),
        in_specs=[
            pl.BlockSpec((rows_blk, D), lambda i: (i, 0)),       # x: tiled over batch blocks
            pl.BlockSpec((D, 2 * Dq_pad), lambda i: (0, 0)),     # weights: constant block ->
            pl.BlockSpec((1, 2 * Dq_pad), lambda i: (0, 0)),     #   fetched once, VMEM-resident
            pl.BlockSpec((D, D_out_pad), lambda i: (0, 0)),
            pl.BlockSpec((1, D_out_pad), lambda i: (0, 0)),
        ],
        out_specs=pl.BlockSpec((rows_blk, D_out_pad), lambda i: (i, 0)),
        compiler_params=pltpu.CompilerParams(
            dimension_semantics=("parallel",),        # shard batch blocks across v7x's 2 TCs
            vmem_limit_bytes=32 * 1024 * 1024),       # raise v5e's 16 MiB default scoped VMEM
    )(xr, wqk, bqk, wg, bg)

    out = out[:B * C, :D].reshape(B, C, T, -1)
    return jnp.transpose(out, (0, 2, 1, 3))


def ref_forward(x, params):
    """Pure-JAX reference mirroring the PyTorch indicator=2 branch."""
    B, T, C, Ff = x.shape
    D = T * Ff
    hd = D // NUM_HEADS
    xr = jnp.transpose(x, (0, 2, 1, 3)).reshape(B, C, D)
    q = xr @ params["in_proj_w"][:D].T + params["in_proj_b"][:D]
    k = xr @ params["in_proj_w"][D:2 * D].T + params["in_proj_b"][D:2 * D]
    qh = q.reshape(B, C, NUM_HEADS, hd).transpose(0, 2, 1, 3)
    kh = k.reshape(B, C, NUM_HEADS, hd).transpose(0, 2, 1, 3)
    s = jnp.einsum("bhqd,bhkd->bhqk", qh, kh) / math.sqrt(hd)
    b_attn = jax.nn.softmax(s, axis=-1).mean(axis=1)
    y = jnp.einsum("bqk,bkd->bqd", b_attn, xr)
    out = y @ params["W_gnn"] + params["B_gnn"]
    return jnp.transpose(out.reshape(B, C, T, -1), (0, 2, 1, 3))


def _xavier_uniform(key, shape):
    fan_in, fan_out = shape[-2], shape[-1]
    limit = math.sqrt(6.0 / (fan_in + fan_out))
    return jax.random.uniform(key, shape, jnp.float32, -limit, limit)


def make_params(key, input_feat, output_feat):
    D_in = input_feat * 7
    D_out = output_feat * 7
    assert D_in == D_out, "MHA(x,x,x) requires input_feat == output_feat"
    D = D_in
    k1, k2, k3, k4 = jax.random.split(key, 4)
    # Only the parameters that affect the indicator=2 output are materialized.
    # TODO(synk): W_head*/W_alpha*/W_cat/W_att* and MHA V/out-proj are dead for indicator=2; skipped.
    return {
        "W_gnn": _xavier_uniform(k1, (D, D)),
        "B_gnn": jax.random.normal(k2, (D,), jnp.float32),
        "in_proj_w": _xavier_uniform(k3, (3 * D, D)),
        "in_proj_b": 0.02 * jax.random.normal(k4, (3 * D,), jnp.float32),
    }


if __name__ == "__main__":
    # Small shapes consistent with the module: C=8 electrodes, D = T*F = output_feat*7 = 56.
    B, T, C, Ff = 2, 8, 8, 7
    input_feat = output_feat = 8  # input_feat*7 = output_feat*7 = 56 = T*Ff

    key = jax.random.PRNGKey(0)
    kx, kp = jax.random.split(key)
    x = jax.random.normal(kx, (B, T, C, Ff), jnp.float32)
    params = make_params(kp, input_feat, output_feat)

    out = jax.block_until_ready(gnn_forward(x, params))
    ref = jax.block_until_ready(ref_forward(x, params))

    assert out.shape == (B, T, C, Ff), out.shape
    # 1e-3 tolerance: pl.reciprocal(approx=True) (~2^-12 relative on the softmax denominator)
    # plus scale-folding into Wq/bq reorder f32 rounding relative to the pure-JAX reference.
    np.testing.assert_allclose(np.asarray(out), np.asarray(ref), rtol=1e-3, atol=1e-3)
    print("KERNEL_OK")
</pallas_src>

<mosaic_0001>
module attributes {stable_mosaic.version = 11 : i64} {
  func.func @_gnn_kernel(%arg0: i32, %arg1: memref<16x56xf32, #tpu.memory_space<vmem>>, %arg2: memref<56x128xf32, #tpu.memory_space<vmem>>, %arg3: memref<1x128xf32, #tpu.memory_space<vmem>>, %arg4: memref<56x128xf32, #tpu.memory_space<vmem>>, %arg5: memref<1x128xf32, #tpu.memory_space<vmem>>, %arg6: memref<16x128xf32, #tpu.memory_space<vmem>>) attributes {dimension_semantics = [#tpu.dimension_semantics<parallel>], iteration_bounds = array<i64: 1>, scalar_prefetch = 0 : i64, scratch_operands = 0 : i64, tpu.core_type = #tpu.core_type<tc>, window_params = [{transform_indices = @transform_0, window_bounds = array<i64: 16, 56>}, {pipeline_mode = #tpu.pipeline_mode<synchronous>, transform_indices = @transform_1, window_bounds = array<i64: 56, 128>}, {pipeline_mode = #tpu.pipeline_mode<synchronous>, transform_indices = @transform_2, window_bounds = array<i64: 1, 128>}, {pipeline_mode = #tpu.pipeline_mode<synchronous>, transform_indices = @transform_3, window_bounds = array<i64: 56, 128>}, {pipeline_mode = #tpu.pipeline_mode<synchronous>, transform_indices = @transform_4, window_bounds = array<i64: 1, 128>}, {transform_indices = @transform_5, window_bounds = array<i64: 16, 128>}]} {
    %c0 = arith.constant 0 : index
    %c0_0 = arith.constant 0 : index
    %0 = vector.load %arg1[%c0, %c0_0] : memref<16x56xf32, #tpu.memory_space<vmem>>, vector<16x56xf32>
    %c0_1 = arith.constant 0 : index
    %c0_2 = arith.constant 0 : index
    %1 = vector.load %arg2[%c0_1, %c0_2] : memref<56x128xf32, #tpu.memory_space<vmem>>, vector<56x128xf32>
    %cst = arith.constant dense<0.000000e+00> : vector<16x128xf32>
    %2 = tpu.matmul %0, %1, %cst {dimension_numbers = #tpu.dot_dimension_numbers<[1], [0], [0], [1], [0, 0, 1, 1], [], []>} : vector<16x56xf32>, vector<56x128xf32>, vector<16x128xf32> -> vector<16x128xf32>
    %c0_3 = arith.constant 0 : index
    %c0_4 = arith.constant 0 : index
    %3 = vector.load %arg3[%c0_3, %c0_4] : memref<1x128xf32, #tpu.memory_space<vmem>>, vector<1x128xf32>
    %4 = vector.broadcast %3 : vector<1x128xf32> to vector<16x128xf32>
    %5 = arith.addf %2, %4 : vector<16x128xf32>
    %6 = vector.extract_strided_slice %5 {offsets = [0, 0], sizes = [16, 16], strides = [1, 1]} : vector<16x128xf32> to vector<16x16xf32>
    %7 = vector.extract_strided_slice %5 {offsets = [0, 16], sizes = [16, 16], strides = [1, 1]} : vector<16x128xf32> to vector<16x16xf32>
    %8 = vector.extract_strided_slice %5 {offsets = [0, 32], sizes = [16, 16], strides = [1, 1]} : vector<16x128xf32> to vector<16x16xf32>
    %9 = vector.extract_strided_slice %5 {offsets = [0, 48], sizes = [16, 16], strides = [1, 1]} : vector<16x128xf32> to vector<16x16xf32>
    %10 = vector.shape_cast %6 : vector<16x16xf32> to vector<1x16x16xf32>
    %11 = vector.shape_cast %7 : vector<16x16xf32> to vector<1x16x16xf32>
    %12 = vector.shape_cast %8 : vector<16x16xf32> to vector<1x16x16xf32>
    %13 = vector.shape_cast %9 : vector<16x16xf32> to vector<1x16x16xf32>
    %14 = tpu.concatenate %10, %11, %12, %13 in 0 : vector<1x16x16xf32>, vector<1x16x16xf32>, vector<1x16x16xf32>, vector<1x16x16xf32> -> vector<4x16x16xf32>
    %15 = vector.extract_strided_slice %5 {offsets = [0, 64], sizes = [16, 16], strides = [1, 1]} : vector<16x128xf32> to vector<16x16xf32>
    %16 = vector.extract_strided_slice %5 {offsets = [0, 80], sizes = [16, 16], strides = [1, 1]} : vector<16x128xf32> to vector<16x16xf32>
    %17 = vector.extract_strided_slice %5 {offsets = [0, 96], sizes = [16, 16], strides = [1, 1]} : vector<16x128xf32> to vector<16x16xf32>
    %18 = vector.extract_strided_slice %5 {offsets = [0, 112], sizes = [16, 16], strides = [1, 1]} : vector<16x128xf32> to vector<16x16xf32>
    %19 = vector.shape_cast %15 : vector<16x16xf32> to vector<1x16x16xf32>
    %20 = vector.shape_cast %16 : vector<16x16xf32> to vector<1x16x16xf32>
    %21 = vector.shape_cast %17 : vector<16x16xf32> to vector<1x16x16xf32>
    %22 = vector.shape_cast %18 : vector<16x16xf32> to vector<1x16x16xf32>
    %23 = tpu.concatenate %19, %20, %21, %22 in 0 : vector<1x16x16xf32>, vector<1x16x16xf32>, vector<1x16x16xf32>, vector<1x16x16xf32> -> vector<4x16x16xf32>
    "tpu.trace_start"() <{level = 10 : i32, message = "hqd,hkd->hqk"}> : () -> ()
    %cst_5 = arith.constant dense<0.000000e+00> : vector<4x16x16xf32>
    %24 = tpu.matmul %14, %23, %cst_5 {dimension_numbers = #tpu.dot_dimension_numbers<[2], [2], [1], [1], [0, 0, 0, 1, 1, 1], [0], [0]>} : vector<4x16x16xf32>, vector<4x16x16xf32>, vector<4x16x16xf32> -> vector<4x16x16xf32>
    "tpu.trace_stop"() : () -> ()
    %25 = tpu.iota {dimensions = array<i32: 0>} : vector<16x16xi32>
    %26 = tpu.iota {dimensions = array<i32: 1>} : vector<16x16xi32>
    %27 = arith.xori %25, %26 : vector<16x16xi32>
    %c8_i32 = arith.constant 8 : i32
    %28 = vector.broadcast %c8_i32 : i32 to vector<16x16xi32>
    %29 = arith.cmpi slt, %27, %28 : vector<16x16xi32>
    %30 = vector.shape_cast %29 : vector<16x16xi1> to vector<1x16x16xi1>
    %cst_6 = arith.constant -1.000000e+30 : f32
    %31 = vector.shape_cast %30 : vector<1x16x16xi1> to vector<1x16x16xi1>
    %32 = vector.broadcast %31 : vector<1x16x16xi1> to vector<4x16x16xi1>
    %33 = vector.broadcast %cst_6 : f32 to vector<4x16x16xf32>
    %34 = arith.select %32, %24, %33 : vector<4x16x16xi1>, vector<4x16x16xf32>
    %cst_7 = arith.constant dense<0xFF800000> : vector<4x16xf32>
    %35 = vector.multi_reduction <maximumf>, %34, %cst_7 [2] : vector<4x16x16xf32> to vector<4x16xf32>
    %36 = vector.shape_cast %35 : vector<4x16xf32> to vector<4x16x1xf32>
    %37 = vector.broadcast %36 : vector<4x16x1xf32> to vector<4x16x16xf32>
    %38 = arith.subf %34, %37 : vector<4x16x16xf32>
    %39 = math.exp %38 : vector<4x16x16xf32>
    %cst_8 = arith.constant dense<0.000000e+00> : vector<4x16xf32>
    %40 = vector.multi_reduction <add>, %39, %cst_8 [2] : vector<4x16x16xf32> to vector<4x16xf32>
    %41 = vector.shape_cast %40 : vector<4x16xf32> to vector<4x16x1xf32>
    %42 = tpu.reciprocal %41 {approx = true} : vector<4x16x1xf32> -> vector<4x16x1xf32>
    %43 = vector.broadcast %42 : vector<4x16x1xf32> to vector<4x16x16xf32>
    %44 = arith.mulf %39, %43 : vector<4x16x16xf32>
    %45 = vector.extract_strided_slice %44 {offsets = [0, 0, 0], sizes = [1, 16, 16], strides = [1, 1, 1]} : vector<4x16x16xf32> to vector<1x16x16xf32>
    %46 = vector.shape_cast %45 : vector<1x16x16xf32> to vector<16x16xf32>
    %47 = vector.extract_strided_slice %44 {offsets = [1, 0, 0], sizes = [1, 16, 16], strides = [1, 1, 1]} : vector<4x16x16xf32> to vector<1x16x16xf32>
    %48 = vector.shape_cast %47 : vector<1x16x16xf32> to vector<16x16xf32>
    %49 = arith.addf %46, %48 : vector<16x16xf32>
    %50 = vector.extract_strided_slice %44 {offsets = [2, 0, 0], sizes = [1, 16, 16], strides = [1, 1, 1]} : vector<4x16x16xf32> to vector<1x16x16xf32>
    %51 = vector.shape_cast %50 : vector<1x16x16xf32> to vector<16x16xf32>
    %52 = arith.addf %49, %51 : vector<16x16xf32>
    %53 = vector.extract_strided_slice %44 {offsets = [3, 0, 0], sizes = [1, 16, 16], strides = [1, 1, 1]} : vector<4x16x16xf32> to vector<1x16x16xf32>
    %54 = vector.shape_cast %53 : vector<1x16x16xf32> to vector<16x16xf32>
    %55 = arith.addf %52, %54 : vector<16x16xf32>
    %cst_9 = arith.constant 2.500000e-01 : f32
    %56 = vector.broadcast %cst_9 : f32 to vector<16x16xf32>
    %57 = arith.mulf %55, %56 : vector<16x16xf32>
    %cst_10 = arith.constant dense<0.000000e+00> : vector<16x56xf32>
    %58 = tpu.matmul %57, %0, %cst_10 {dimension_numbers = #tpu.dot_dimension_numbers<[1], [0], [0], [1], [0, 0, 1, 1], [], []>} : vector<16x16xf32>, vector<16x56xf32>, vector<16x56xf32> -> vector<16x56xf32>
    %c0_11 = arith.constant 0 : index
    %c0_12 = arith.constant 0 : index
    %59 = vector.load %arg4[%c0_11, %c0_12] : memref<56x128xf32, #tpu.memory_space<vmem>>, vector<56x128xf32>
    %cst_13 = arith.constant dense<0.000000e+00> : vector<16x128xf32>
    %60 = tpu.matmul %58, %59, %cst_13 {dimension_numbers = #tpu.dot_dimension_numbers<[1], [0], [0], [1], [0, 0, 1, 1], [], []>} : vector<16x56xf32>, vector<56x128xf32>, vector<16x128xf32> -> vector<16x128xf32>
    %c0_14 = arith.constant 0 : index
    %c0_15 = arith.constant 0 : index
    %61 = vector.load %arg5[%c0_14, %c0_15] : memref<1x128xf32, #tpu.memory_space<vmem>>, vector<1x128xf32>
    %62 = vector.broadcast %61 : vector<1x128xf32> to vector<16x128xf32>
    %63 = arith.addf %60, %62 : vector<16x128xf32>
    %c0_16 = arith.constant 0 : index
    %c0_17 = arith.constant 0 : index
    %64 = vector.load %arg6[%c0_16, %c0_17] : memref<16x128xf32, #tpu.memory_space<vmem>>, vector<16x128xf32>
    tpu.vector_store %arg6[%c0_16, %c0_17], %63 {strides = array<i32>} : memref<16x128xf32, #tpu.memory_space<vmem>>, vector<16x128xf32>,
    return
  }
  func.func @transform_0(%arg0: i32) -> (i32, i32) {
    %c0_i32 = arith.constant 0 : i32
    %c0_i32_0 = arith.constant 0 : i32
    return %arg0, %c0_i32 : i32, i32
  }
  func.func @transform_1(%arg0: i32) -> (i32, i32) {
    %c0_i32 = arith.constant 0 : i32
    %c0_i32_0 = arith.constant 0 : i32
    %c0_i32_1 = arith.constant 0 : i32
    return %c0_i32, %c0_i32_0 : i32, i32
  }
  func.func @transform_2(%arg0: i32) -> (i32, i32) {
    %c0_i32 = arith.constant 0 : i32
    %c0_i32_0 = arith.constant 0 : i32
    %c0_i32_1 = arith.constant 0 : i32
    return %c0_i32, %c0_i32_0 : i32, i32
  }
  func.func @transform_3(%arg0: i32) -> (i32, i32) {
    %c0_i32 = arith.constant 0 : i32
    %c0_i32_0 = arith.constant 0 : i32
    %c0_i32_1 = arith.constant 0 : i32
    return %c0_i32, %c0_i32_0 : i32, i32
  }
  func.func @transform_4(%arg0: i32) -> (i32, i32) {
    %c0_i32 = arith.constant 0 : i32
    %c0_i32_0 = arith.constant 0 : i32
    %c0_i32_1 = arith.constant 0 : i32
    return %c0_i32, %c0_i32_0 : i32, i32
  }
  func.func @transform_5(%arg0: i32) -> (i32, i32) {
    %c0_i32 = arith.constant 0 : i32
    %c0_i32_0 = arith.constant 0 : i32
    return %arg0, %c0_i32 : i32, i32
  }
}

</mosaic_0001>

<llo_original>
// kernel: tpu_custom_call.1
$region0: #{tpu_custom_call.1}
  #allocation0 [shape = 'u32[]', space=smem, size = 0x4, offset = 0x4, fixed_abs, tag = 'smem constant byte address 0x4 - core index']
  #allocation1 [shape = 'u32[144,128]{1,0:T(1,128)}', space=vmem, size = 0x12000, scoped, tag = 'internal scratch']
  %s0 = inlined_call_operand.hbm [shape: f32[16,56], index: 0, kind: input, shape index: {}]
  %s1 = inlined_call_operand.hbm [shape: f32[56,128], index: 1, kind: input, shape index: {}]
  %s2 = inlined_call_operand.vmem [shape: f32[1,128], index: 2, kind: input, shape index: {}]
  %s3 = inlined_call_operand.hbm [shape: f32[56,128], index: 3, kind: input, shape index: {}]
  %s4 = inlined_call_operand.vmem [shape: f32[1,128], index: 4, kind: input, shape index: {}]
  %s5 = inlined_call_operand.hbm [shape: f32[16,128], index: 5, kind: output, shape index: {}]
  %s6 = sld [smem:[#allocation0]]
  $region42: #{tpu_custom_call.1} parent=0
    _
  %s8 = ssub.s32 1, %s6
  %s9 = scalar_select 0, %s8, %s6
  $region1: #{tpu_custom_call.1} parent=0
    #allocation2 [shape = 'u8[8192]{0}', space=vmem, size = 0x2000, scoped, tag = 'input window, operand 0, single buffered']
    #allocation3 [shape = 's32[1]{0}', space=sflag, size = 0x4, scoped, tag = 'scoped memory for tpu_custom_call.1']
    #allocation4 [shape = 's32[1]{0}', space=sflag, size = 0x4, scoped, tag = 'scoped memory for tpu_custom_call.1']
    #allocation5 [shape = 'u8[28672]{0}', space=vmem, size = 0x7000, scoped, tag = 'input window, operand 1, single buffered']
    #allocation6 [shape = 's32[1]{0}', space=sflag, size = 0x4, scoped, tag = 'scoped memory for tpu_custom_call.1']
    #allocation7 [shape = 'u8[28672]{0}', space=vmem, size = 0x7000, scoped, tag = 'input window, operand 3, single buffered']
    #allocation8 [shape = 'u8[8192]{0}', space=vmem, size = 0x2000, scoped, tag = 'output window, operand 0, single buffered']
    %10 = vsyncpa [#allocation3], 0
    %11 = vsyncpa [#allocation6], 0
    %12 = vsyncpa [#allocation4], 0
    // Predicated region
    $region2: #{tpu_custom_call.1} parent=1 // pred_check
      _
    $region3: #{tpu_custom_call.1} parent=1 // pred_check_branch
      %14 = sbr.rel (0) target = $region5
    $region4: #{tpu_custom_call.1} parent=1 // pred_region
      %s16 = ssub.s32 256, 256
      %17 = vsyncadd [#allocation3], %s16
      %s18 = sshll.u32 [#allocation2], 4
      %s19 = int_to_ptr.vmem [resolvable:$true] %s18
      %24 = dma.hbm_to_vmem [thread:$0]  %s0, 256, %s19, [#allocation3], 128, 128, 8
    $region5: #{tpu_custom_call.1} parent=1 // pred_fallthru
      _
    // Predicated region
    $region6: #{tpu_custom_call.1} parent=1 // pred_check
      _
    $region7: #{tpu_custom_call.1} parent=1 // pred_check_branch
      %26 = sbr.rel (0) target = $region9
    $region8: #{tpu_custom_call.1} parent=1 // pred_region
      %s28 = ssub.s32 896, 896
      %29 = vsyncadd [#allocation6], %s28
      %s30 = sshll.u32 [#allocation5], 4
      %s31 = int_to_ptr.vmem [resolvable:$true] %s30
      %36 = dma.hbm_to_vmem [thread:$0]  %s1, 896, %s31, [#allocation6], 128, 128, 8
    $region9: #{tpu_custom_call.1} parent=1 // pred_fallthru
      _
    // Predicated region
    $region10: #{tpu_custom_call.1} parent=1 // pred_check
      _
    $region11: #{tpu_custom_call.1} parent=1 // pred_check_branch
      %38 = sbr.rel (0) target = $region13
    $region12: #{tpu_custom_call.1} parent=1 // pred_region
      _
    $region13: #{tpu_custom_call.1} parent=1 // pred_fallthru
      _
    // Predicated region
    $region14: #{tpu_custom_call.1} parent=1 // pred_check
      _
    $region15: #{tpu_custom_call.1} parent=1 // pred_check_branch
      %40 = sbr.rel (0) target = $region17
    $region16: #{tpu_custom_call.1} parent=1 // pred_region
      %s42 = ssub.s32 896, 896
      %43 = vsyncadd [#allocation6], %s42
      %s44 = sshll.u32 [#allocation7], 4
      %s45 = int_to_ptr.vmem [resolvable:$true] %s44
      %50 = dma.hbm_to_vmem [thread:$0]  %s3, 896, %s45, [#allocation6], 128, 128, 8
    $region17: #{tpu_custom_call.1} parent=1 // pred_fallthru
      _
    // Predicated region
    $region18: #{tpu_custom_call.1} parent=1 // pred_check
      _
    $region19: #{tpu_custom_call.1} parent=1 // pred_check_branch
      %52 = sbr.rel (0) target = $region21
    $region20: #{tpu_custom_call.1} parent=1 // pred_region
      _
    $region21: #{tpu_custom_call.1} parent=1 // pred_fallthru
      _
    // Predicated region
    $region22: #{tpu_custom_call.1} parent=1 // pred_check
      _
    $region23: #{tpu_custom_call.1} parent=1 // pred_check_branch
      %54 = sbr.rel (0) target = $region25
    $region24: #{tpu_custom_call.1} parent=1 // pred_region
      %55 = dma.done [#allocation3], 256
    $region25: #{tpu_custom_call.1} parent=1 // pred_fallthru
      _
    // Predicated region
    $region26: #{tpu_custom_call.1} parent=1 // pred_check
      _
    $region27: #{tpu_custom_call.1} parent=1 // pred_check_branch
      %57 = sbr.rel (0) target = $region29
    $region28: #{tpu_custom_call.1} parent=1 // pred_region
      %58 = dma.done [#allocation6], 896
    $region29: #{tpu_custom_call.1} parent=1 // pred_fallthru
      _
    // Predicated region
    $region30: #{tpu_custom_call.1} parent=1 // pred_check
      _
    $region31: #{tpu_custom_call.1} parent=1 // pred_check_branch
      %60 = sbr.rel (0) target = $region33
    $region32: #{tpu_custom_call.1} parent=1 // pred_region
      %61 = dma.done [#allocation6], 896
    $region33: #{tpu_custom_call.1} parent=1 // pred_fallthru
      _
    %v62 = vld [vmem:[#allocation2] sm:$0xff]
    %v63 = vld [vmem:[#allocation2 + $0x8] sm:$0xff]
    %v64 = vld [vmem:[#allocation5] sm:$0xff]
    %v65 = vld [vmem:[#allocation5 + $0x8] sm:$0xff]
    %v66 = vld [vmem:[#allocation5 + $0x10] sm:$0xff]
    %v67 = vld [vmem:[#allocation5 + $0x18] sm:$0xff]
    %v68 = vld [vmem:[#allocation5 + $0x20] sm:$0xff]
    %v69 = vld [vmem:[#allocation5 + $0x28] sm:$0xff]
    %v70 = vld [vmem:[#allocation5 + $0x30] sm:$0xff]
    %v71 = vld [vmem:[%s2] sm:$0x1]
    %v73 = vlaneseq
    %v74 = vshrl.u32 %v73, 7
    %v75 = vsub.s32 0, %v74
    %v76 = vrot.slane %v71, %v75
    %vm78 = vcmask 457728
    %v80 = vsel %vm78, %v62, 0
    %v83 = vsel %vm78, %v63, 0
    %85 = vmatprep.subr.mxu0 0.0
    %86 = vmatpush1.msra.mxu0 %v64
    %87 = vmatprep.subr.mxu0 0.0
    %88 = vmatpush1.msra.mxu0 %v65
    %89 = vmatprep.subr.mxu0 0.0
    %90 = vmatpush1.msra.mxu0 %v66
    %91 = vmatprep.subr.mxu0 0.0
    %92 = vmatpush1.msra.mxu0 %v67
    %93 = vmatprep.subr.mxu0 0.0
    %94 = vmatpush1.msra.mxu0 %v68
    %95 = vmatprep.subr.mxu0 0.0
    %96 = vmatpush1.msra.mxu0 %v69
    %97 = vmatprep.subr.mxu0 0.0
    %98 = vmatpush1.msra.mxu0 %v70
    %99 = vmatprep.subr.mxu0 0.0
    %100 = vmatpush1.msra.mxu0 0.0
    %101 = vmatprep.subr.mxu0 0.0
    %102 = vmatpush1.msra.mxu0 0.0
    %103 = vmatprep.subr.mxu0 0.0
    %104 = vmatpush1.msra.mxu0 0.0
    %105 = vmatprep.subr.mxu0 0.0
    %106 = vmatpush1.msra.mxu0 0.0
    %107 = vmatprep.subr.mxu0 0.0
    %108 = vmatpush1.msra.mxu0 0.0
    %109 = vmatprep.subr.mxu0 0.0
    %110 = vmatpush1.msra.mxu0 0.0
    %111 = vmatprep.subr.mxu0 0.0
    %112 = vmatpush1.msra.mxu0 0.0
    %113 = vmatprep.subr.mxu0 0.0
    %114 = vmatpush1.msra.mxu0 0.0
    %115 = vmatprep.subr.mxu0 0.0
    %116 = vmatpush1.msra.mxu0 0.0
    %117 = vmatprep.subr.mxu0 0.0
    %118 = vmatpush1.msra.mxu0 0.0
    %119 = vmatprep.subr.mxu0 0.0
    %120 = vmatpush1.msra.mxu0 0.0
    %121 = vmatprep.subr.mxu0 0.0
    %122 = vmatpush1.msra.mxu0 0.0
    %123 = vmatprep.subr.mxu0 0.0
    %124 = vmatpush1.msra.mxu0 0.0
    %125 = vmatprep.subr.mxu0 0.0
    %126 = vmatpush1.msra.mxu0 0.0
    %127 = vmatprep.subr.mxu0 0.0
    %128 = vmatpush1.msra.mxu0 0.0
    %129 = vmatprep.subr.mxu0 0.0
    %130 = vmatpush1.msra.mxu0 0.0
    %131 = vmatprep.subr.mxu0 0.0
    %132 = vmatpush1.msra.mxu0 0.0
    %133 = vmatprep.subr.mxu0 0.0
    %134 = vmatpush1.msra.mxu0 0.0
    %135 = vmatprep.subr.mxu0 0.0
    %136 = vmatpush1.msra.mxu0 0.0
    %137 = vmatprep.subr.mxu0 0.0
    %138 = vmatpush1.msra.mxu0 0.0
    %139 = vmatprep.subr.mxu0 0.0
    %140 = vmatpush1.msra.mxu0 0.0
    %141 = vmatprep.subr.mxu0 0.0
    %142 = vmatpush1.msra.mxu0 0.0
    %143 = vmatprep.subr.mxu0 0.0
    %144 = vmatpush1.msra.mxu0 0.0
    %145 = vmatprep.subr.mxu0 0.0
    %146 = vmatpush1.msra.mxu0 0.0
    %147 = vmatprep.subr.mxu0 0.0
    %148 = vmatpush1.msra.mxu0 0.0
    %149 = vmatprep.mubr.f32.mxu0 0.0
    %150 = vmatmul.mubr.f32.gmra.mrb[0].mxu0 %v80
    %v151 = vpop.f32.mrb[0].mxu0
    %v152 = vadd.f32 %v76, %v151
    %v153 = vpop.f32.mrb[0].mxu0
    %154 = vmatprep.mubr.f32.mxu0 0.0
    %155 = vmatmul.mubr.f32.gmra.mrb[0].mxu0 %v83
    %v156 = vpop.f32.mrb[0].mxu0
    %v157 = vadd.f32 %v76, %v156
    %v158 = vpop.f32.mrb[0].mxu0
    %159 = vdwg.mxu0
    %162 = vrot.lane.b32.xlu0 %v152, 112
    %v163 = vpop.permute.xlu0 %162
    %164 = vrot.lane.b32.xlu0 %v157, 112
    %v165 = vpop.permute.xlu0 %164
    %166 = vrot.lane.b32.xlu0 %v152, 96
    %v167 = vpop.permute.xlu0 %166
    %168 = vrot.lane.b32.xlu0 %v157, 96
    %v169 = vpop.permute.xlu0 %168
    %170 = vrot.lane.b32.xlu0 %v152, 80
    %v171 = vpop.permute.xlu0 %170
    %172 = vrot.lane.b32.xlu0 %v157, 80
    %v173 = vpop.permute.xlu0 %172
    %174 = vrot.lane.b32.xlu0 %v152, 64
    %v175 = vpop.permute.xlu0 %174
    %176 = vrot.lane.b32.xlu0 %v157, 64
    %v177 = vpop.permute.xlu0 %176
    %vm178 = vcmask 130048
    %v179 = vsel %vm178, %v152, 0
    %v181 = vsel %vm178, %v157, 0
    %v183 = vsel %vm178, %v175, 0
    %v185 = vsel %vm178, %v177, 0
    %187 = vmatprep.subr.mxu0 0.0
    %188 = vmatpush1.xpose.msra.mxu0 %v183
    %189 = vmatprep.subr.mxu0 0.0
    %190 = vmatpush1.xpose.msra.mxu0 %v185
    %191 = vmatprep.subr.mxu0 0.0
    %192 = vmatpush1.xpose.msra.mxu0 0.0
    %193 = vmatprep.subr.mxu0 0.0
    %194 = vmatpush1.xpose.msra.mxu0 0.0
    %195 = vmatprep.subr.mxu0 0.0
    %196 = vmatpush1.xpose.msra.mxu0 0.0
    %197 = vmatprep.subr.mxu0 0.0
    %198 = vmatpush1.xpose.msra.mxu0 0.0
    %199 = vmatprep.subr.mxu0 0.0
    %200 = vmatpush1.xpose.msra.mxu0 0.0
    %201 = vmatprep.subr.mxu0 0.0
    %202 = vmatpush1.xpose.msra.mxu0 0.0
    %203 = vmatprep.subr.mxu0 0.0
    %204 = vmatpush1.xpose.msra.mxu0 0.0
    %205 = vmatprep.subr.mxu0 0.0
    %206 = vmatpush1.xpose.msra.mxu0 0.0
    %207 = vmatprep.subr.mxu0 0.0
    %208 = vmatpush1.xpose.msra.mxu0 0.0
    %209 = vmatprep.subr.mxu0 0.0
    %210 = vmatpush1.xpose.msra.mxu0 0.0
    %211 = vmatprep.subr.mxu0 0.0
    %212 = vmatpush1.xpose.msra.mxu0 0.0
    %213 = vmatprep.subr.mxu0 0.0
    %214 = vmatpush1.xpose.msra.mxu0 0.0
    %215 = vmatprep.subr.mxu0 0.0
    %216 = vmatpush1.xpose.msra.mxu0 0.0
    %217 = vmatprep.subr.mxu0 0.0
    %218 = vmatpush1.xpose.msra.mxu0 0.0
    %219 = vmatprep.subr.mxu0 0.0
    %220 = vmatpush1.xpose.msra.mxu0 0.0
    %221 = vmatprep.subr.mxu0 0.0
    %222 = vmatpush1.xpose.msra.mxu0 0.0
    %223 = vmatprep.subr.mxu0 0.0
    %224 = vmatpush1.xpose.msra.mxu0 0.0
    %225 = vmatprep.subr.mxu0 0.0
    %226 = vmatpush1.xpose.msra.mxu0 0.0
    %227 = vmatprep.subr.mxu0 0.0
    %228 = vmatpush1.xpose.msra.mxu0 0.0
    %229 = vmatprep.subr.mxu0 0.0
    %230 = vmatpush1.xpose.msra.mxu0 0.0
    %231 = vmatprep.subr.mxu0 0.0
    %232 = vmatpush1.xpose.msra.mxu0 0.0
    %233 = vmatprep.subr.mxu0 0.0
    %234 = vmatpush1.xpose.msra.mxu0 0.0
    %235 = vmatprep.subr.mxu0 0.0
    %236 = vmatpush1.xpose.msra.mxu0 0.0
    %237 = vmatprep.subr.mxu0 0.0
    %238 = vmatpush1.xpose.msra.mxu0 0.0
    %239 = vmatprep.subr.mxu0 0.0
    %240 = vmatpush1.xpose.msra.mxu0 0.0
    %241 = vmatprep.subr.mxu0 0.0
    %242 = vmatpush1.xpose.msra.mxu0 0.0
    %243 = vmatprep.subr.mxu0 0.0
    %244 = vmatpush1.xpose.msra.mxu0 0.0
    %245 = vmatprep.subr.mxu0 0.0
    %246 = vmatpush1.xpose.msra.mxu0 0.0
    %247 = vmatprep.subr.mxu0 0.0
    %248 = vmatpush1.xpose.msra.mxu0 0.0
    %249 = vmatprep.subr.mxu0 0.0
    %250 = vmatpush1.xpose.msra.mxu0 0.0
    %251 = vmatprep.mubr.f32.mxu0 0.0
    %252 = vmatmul.mubr.f32.gmra.mrb[0].mxu0 %v179
    %v253 = vpop.f32.mrb[0].mxu0
    %v254 = vadd.f32 0.0, %v253
    %v255 = vpop.f32.mrb[0].mxu0
    %256 = vmatprep.mubr.f32.mxu0 0.0
    %257 = vmatmul.mubr.f32.gmra.mrb[0].mxu0 %v181
    %v258 = vpop.f32.mrb[0].mxu0
    %v259 = vadd.f32 0.0, %v258
    %v260 = vpop.f32.mrb[0].mxu0
    %261 = vdwg.mxu0
    %262 = vrot.lane.b32.xlu0 %v163, 64
    %v263 = vpop.permute.xlu0 %262
    %264 = vrot.lane.b32.xlu0 %v165, 64
    %v265 = vpop.permute.xlu0 %264
    %v266 = vsel %vm178, %v163, 0
    %v268 = vsel %vm178, %v165, 0
    %v270 = vsel %vm178, %v263, 0
    %v272 = vsel %vm178, %v265, 0
    %274 = vmatprep.subr.mxu0 0.0
    %275 = vmatpush1.xpose.msra.mxu0 %v270
    %276 = vmatprep.subr.mxu0 0.0
    %277 = vmatpush1.xpose.msra.mxu0 %v272
    %278 = vmatprep.subr.mxu0 0.0
    %279 = vmatpush1.xpose.msra.mxu0 0.0
    %280 = vmatprep.subr.mxu0 0.0
    %281 = vmatpush1.xpose.msra.mxu0 0.0
    %282 = vmatprep.subr.mxu0 0.0
    %283 = vmatpush1.xpose.msra.mxu0 0.0
    %284 = vmatprep.subr.mxu0 0.0
    %285 = vmatpush1.xpose.msra.mxu0 0.0
    %286 = vmatprep.subr.mxu0 0.0
    %287 = vmatpush1.xpose.msra.mxu0 0.0
    %288 = vmatprep.subr.mxu0 0.0
    %289 = vmatpush1.xpose.msra.mxu0 0.0
    %290 = vmatprep.subr.mxu0 0.0
    %291 = vmatpush1.xpose.msra.mxu0 0.0
    %292 = vmatprep.subr.mxu0 0.0
    %293 = vmatpush1.xpose.msra.mxu0 0.0
    %294 = vmatprep.subr.mxu0 0.0
    %295 = vmatpush1.xpose.msra.mxu0 0.0
    %296 = vmatprep.subr.mxu0 0.0
    %297 = vmatpush1.xpose.msra.mxu0 0.0
    %298 = vmatprep.subr.mxu0 0.0
    %299 = vmatpush1.xpose.msra.mxu0 0.0
    %300 = vmatprep.subr.mxu0 0.0
    %301 = vmatpush1.xpose.msra.mxu0 0.0
    %302 = vmatprep.subr.mxu0 0.0
    %303 = vmatpush1.xpose.msra.mxu0 0.0
    %304 = vmatprep.subr.mxu0 0.0
    %305 = vmatpush1.xpose.msra.mxu0 0.0
    %306 = vmatprep.subr.mxu0 0.0
    %307 = vmatpush1.xpose.msra.mxu0 0.0
    %308 = vmatprep.subr.mxu0 0.0
    %309 = vmatpush1.xpose.msra.mxu0 0.0
    %310 = vmatprep.subr.mxu0 0.0
    %311 = vmatpush1.xpose.msra.mxu0 0.0
    %312 = vmatprep.subr.mxu0 0.0
    %313 = vmatpush1.xpose.msra.mxu0 0.0
    %314 = vmatprep.subr.mxu0 0.0
    %315 = vmatpush1.xpose.msra.mxu0 0.0
    %316 = vmatprep.subr.mxu0 0.0
    %317 = vmatpush1.xpose.msra.mxu0 0.0
    %318 = vmatprep.subr.mxu0 0.0
    %319 = vmatpush1.xpose.msra.mxu0 0.0
    %320 = vmatprep.subr.mxu0 0.0
    %321 = vmatpush1.xpose.msra.mxu0 0.0
    %322 = vmatprep.subr.mxu0 0.0
    %323 = vmatpush1.xpose.msra.mxu0 0.0
    %324 = vmatprep.subr.mxu0 0.0
    %325 = vmatpush1.xpose.msra.mxu0 0.0
    %326 = vmatprep.subr.mxu0 0.0
    %327 = vmatpush1.xpose.msra.mxu0 0.0
    %328 = vmatprep.subr.mxu0 0.0
    %329 = vmatpush1.xpose.msra.mxu0 0.0
    %330 = vmatprep.subr.mxu0 0.0
    %331 = vmatpush1.xpose.msra.mxu0 0.0
    %332 = vmatprep.subr.mxu0 0.0
    %333 = vmatpush1.xpose.msra.mxu0 0.0
    %334 = vmatprep.subr.mxu0 0.0
    %335 = vmatpush1.xpose.msra.mxu0 0.0
    %336 = vmatprep.subr.mxu0 0.0
    %337 = vmatpush1.xpose.msra.mxu0 0.0
    %338 = vmatprep.mubr.f32.mxu0 0.0
    %339 = vmatmul.mubr.f32.gmra.mrb[0].mxu0 %v266
    %v340 = vpop.f32.mrb[0].mxu0
    %v341 = vadd.f32 0.0, %v340
    %v342 = vpop.f32.mrb[0].mxu0
    %343 = vmatprep.mubr.f32.mxu0 0.0
    %344 = vmatmul.mubr.f32.gmra.mrb[0].mxu0 %v268
    %v345 = vpop.f32.mrb[0].mxu0
    %v346 = vadd.f32 0.0, %v345
    %v347 = vpop.f32.mrb[0].mxu0
    %348 = vdwg.mxu0
    %349 = vrot.lane.b32.xlu0 %v167, 64
    %v350 = vpop.permute.xlu0 %349
    %351 = vrot.lane.b32.xlu0 %v169, 64
    %v352 = vpop.permute.xlu0 %351
    %v353 = vsel %vm178, %v167, 0
    %v355 = vsel %vm178, %v169, 0
    %v357 = vsel %vm178, %v350, 0
    %v359 = vsel %vm178, %v352, 0
    %361 = vmatprep.subr.mxu0 0.0
    %362 = vmatpush1.xpose.msra.mxu0 %v357
    %363 = vmatprep.subr.mxu0 0.0
    %364 = vmatpush1.xpose.msra.mxu0 %v359
    %365 = vmatprep.subr.mxu0 0.0
    %366 = vmatpush1.xpose.msra.mxu0 0.0
    %367 = vmatprep.subr.mxu0 0.0
    %368 = vmatpush1.xpose.msra.mxu0 0.0
    %369 = vmatprep.subr.mxu0 0.0
    %370 = vmatpush1.xpose.msra.mxu0 0.0
    %371 = vmatprep.subr.mxu0 0.0
    %372 = vmatpush1.xpose.msra.mxu0 0.0
    %373 = vmatprep.subr.mxu0 0.0
    %374 = vmatpush1.xpose.msra.mxu0 0.0
    %375 = vmatprep.subr.mxu0 0.0
    %376 = vmatpush1.xpose.msra.mxu0 0.0
    %377 = vmatprep.subr.mxu0 0.0
    %378 = vmatpush1.xpose.msra.mxu0 0.0
    %379 = vmatprep.subr.mxu0 0.0
    %380 = vmatpush1.xpose.msra.mxu0 0.0
    %381 = vmatprep.subr.mxu0 0.0
    %382 = vmatpush1.xpose.msra.mxu0 0.0
    %383 = vmatprep.subr.mxu0 0.0
    %384 = vmatpush1.xpose.msra.mxu0 0.0
    %385 = vmatprep.subr.mxu0 0.0
    %386 = vmatpush1.xpose.msra.mxu0 0.0
    %387 = vmatprep.subr.mxu0 0.0
    %388 = vmatpush1.xpose.msra.mxu0 0.0
    %389 = vmatprep.subr.mxu0 0.0
    %390 = vmatpush1.xpose.msra.mxu0 0.0
    %391 = vmatprep.subr.mxu0 0.0
    %392 = vmatpush1.xpose.msra.mxu0 0.0
    %393 = vmatprep.subr.mxu0 0.0
    %394 = vmatpush1.xpose.msra.mxu0 0.0
    %395 = vmatprep.subr.mxu0 0.0
    %396 = vmatpush1.xpose.msra.mxu0 0.0
    %397 = vmatprep.subr.mxu0 0.0
    %398 = vmatpush1.xpose.msra.mxu0 0.0
    %399 = vmatprep.subr.mxu0 0.0
    %400 = vmatpush1.xpose.msra.mxu0 0.0
    %401 = vmatprep.subr.mxu0 0.0
    %402 = vmatpush1.xpose.msra.mxu0 0.0
    %403 = vmatprep.subr.mxu0 0.0
    %404 = vmatpush1.xpose.msra.mxu0 0.0
    %405 = vmatprep.subr.mxu0 0.0
    %406 = vmatpush1.xpose.msra.mxu0 0.0
    %407 = vmatprep.subr.mxu0 0.0
    %408 = vmatpush1.xpose.msra.mxu0 0.0
    %409 = vmatprep.subr.mxu0 0.0
    %410 = vmatpush1.xpose.msra.mxu0 0.0
    %411 = vmatprep.subr.mxu0 0.0
    %412 = vmatpush1.xpose.msra.mxu0 0.0
    %413 = vmatprep.subr.mxu0 0.0
    %414 = vmatpush1.xpose.msra.mxu0 0.0
    %415 = vmatprep.subr.mxu0 0.0
    %416 = vmatpush1.xpose.msra.mxu0 0.0
    %417 = vmatprep.subr.mxu0 0.0
    %418 = vmatpush1.xpose.msra.mxu0 0.0
    %419 = vmatprep.subr.mxu0 0.0
    %420 = vmatpush1.xpose.msra.mxu0 0.0
    %421 = vmatprep.subr.mxu0 0.0
    %422 = vmatpush1.xpose.msra.mxu0 0.0
    %423 = vmatprep.subr.mxu0 0.0
    %424 = vmatpush1.xpose.msra.mxu0 0.0
    %425 = vmatprep.mubr.f32.mxu0 0.0
    %426 = vmatmul.mubr.f32.gmra.mrb[0].mxu0 %v353
    %v427 = vpop.f32.mrb[0].mxu0
    %v428 = vadd.f32 0.0, %v427
    %v429 = vpop.f32.mrb[0].mxu0
    %430 = vmatprep.mubr.f32.mxu0 0.0
    %431 = vmatmul.mubr.f32.gmra.mrb[0].mxu0 %v355
    %v432 = vpop.f32.mrb[0].mxu0
    %v433 = vadd.f32 0.0, %v432
    %v434 = vpop.f32.mrb[0].mxu0
    %435 = vdwg.mxu0
    %436 = vrot.lane.b32.xlu0 %v171, 64
    %v437 = vpop.permute.xlu0 %436
    %438 = vrot.lane.b32.xlu0 %v173, 64
    %v439 = vpop.permute.xlu0 %438
    %v440 = vsel %vm178, %v171, 0
    %v442 = vsel %vm178, %v173, 0
    %v444 = vsel %vm178, %v437, 0
    %v446 = vsel %vm178, %v439, 0
    %448 = vmatprep.subr.mxu0 0.0
    %449 = vmatpush1.xpose.msra.mxu0 %v444
    %450 = vmatprep.subr.mxu0 0.0
    %451 = vmatpush1.xpose.msra.mxu0 %v446
    %452 = vmatprep.subr.mxu0 0.0
    %453 = vmatpush1.xpose.msra.mxu0 0.0
    %454 = vmatprep.subr.mxu0 0.0
    %455 = vmatpush1.xpose.msra.mxu0 0.0
    %456 = vmatprep.subr.mxu0 0.0
    %457 = vmatpush1.xpose.msra.mxu0 0.0
    %458 = vmatprep.subr.mxu0 0.0
    %459 = vmatpush1.xpose.msra.mxu0 0.0
    %460 = vmatprep.subr.mxu0 0.0
    %461 = vmatpush1.xpose.msra.mxu0 0.0
    %462 = vmatprep.subr.mxu0 0.0
    %463 = vmatpush1.xpose.msra.mxu0 0.0
    %464 = vmatprep.subr.mxu0 0.0
    %465 = vmatpush1.xpose.msra.mxu0 0.0
    %466 = vmatprep.subr.mxu0 0.0
    %467 = vmatpush1.xpose.msra.mxu0 0.0
    %468 = vmatprep.subr.mxu0 0.0
    %469 = vmatpush1.xpose.msra.mxu0 0.0
    %470 = vmatprep.subr.mxu0 0.0
    %471 = vmatpush1.xpose.msra.mxu0 0.0
    %472 = vmatprep.subr.mxu0 0.0
    %473 = vmatpush1.xpose.msra.mxu0 0.0
    %474 = vmatprep.subr.mxu0 0.0
    %475 = vmatpush1.xpose.msra.mxu0 0.0
    %476 = vmatprep.subr.mxu0 0.0
    %477 = vmatpush1.xpose.msra.mxu0 0.0
    %478 = vmatprep.subr.mxu0 0.0
    %479 = vmatpush1.xpose.msra.mxu0 0.0
    %480 = vmatprep.subr.mxu0 0.0
    %481 = vmatpush1.xpose.msra.mxu0 0.0
    %482 = vmatprep.subr.mxu0 0.0
    %483 = vmatpush1.xpose.msra.mxu0 0.0
    %484 = vmatprep.subr.mxu0 0.0
    %485 = vmatpush1.xpose.msra.mxu0 0.0
    %486 = vmatprep.subr.mxu0 0.0
    %487 = vmatpush1.xpose.msra.mxu0 0.0
    %488 = vmatprep.subr.mxu0 0.0
    %489 = vmatpush1.xpose.msra.mxu0 0.0
    %490 = vmatprep.subr.mxu0 0.0
    %491 = vmatpush1.xpose.msra.mxu0 0.0
    %492 = vmatprep.subr.mxu0 0.0
    %493 = vmatpush1.xpose.msra.mxu0 0.0
    %494 = vmatprep.subr.mxu0 0.0
    %495 = vmatpush1.xpose.msra.mxu0 0.0
    %496 = vmatprep.subr.mxu0 0.0
    %497 = vmatpush1.xpose.msra.mxu0 0.0
    %498 = vmatprep.subr.mxu0 0.0
    %499 = vmatpush1.xpose.msra.mxu0 0.0
    %500 = vmatprep.subr.mxu0 0.0
    %501 = vmatpush1.xpose.msra.mxu0 0.0
    %502 = vmatprep.subr.mxu0 0.0
    %503 = vmatpush1.xpose.msra.mxu0 0.0
    %504 = vmatprep.subr.mxu0 0.0
    %505 = vmatpush1.xpose.msra.mxu0 0.0
    %506 = vmatprep.subr.mxu0 0.0
    %507 = vmatpush1.xpose.msra.mxu0 0.0
    %508 = vmatprep.subr.mxu0 0.0
    %509 = vmatpush1.xpose.msra.mxu0 0.0
    %510 = vmatprep.subr.mxu0 0.0
    %511 = vmatpush1.xpose.msra.mxu0 0.0
    %512 = vmatprep.mubr.f32.mxu0 0.0
    %513 = vmatmul.mubr.f32.gmra.mrb[0].mxu0 %v440
    %v514 = vpop.f32.mrb[0].mxu0
    %v515 = vadd.f32 0.0, %v514
    %v516 = vpop.f32.mrb[0].mxu0
    %517 = vmatprep.mubr.f32.mxu0 0.0
    %518 = vmatmul.mubr.f32.gmra.mrb[0].mxu0 %v442
    %v519 = vpop.f32.mrb[0].mxu0
    %v520 = vadd.f32 0.0, %v519
    %v521 = vpop.f32.mrb[0].mxu0
    %522 = vdwg.mxu0
    %v523 = vlaneseq
    %v524 = vshrl.u32 %v523, 7
    %v525 = vadd.s32 %v524, 8
    %v526 = vlaneseq
    %v527 = vand.u32 %v526, 127
    %v528 = vxor.u32 %v524, %v527
    %v529 = vxor.u32 %v525, %v527
    %vm530 = vcmp.lt.s32.totalorder %v528, 8
    %vm531 = vcmp.lt.s32.totalorder %v529, 8
    %v532 = vsel %vm530, 1, 0
    %v533 = vsel %vm531, 1, 0
    %vm534 = vcmp.eq.s32.totalorder %v532, 1
    %vm535 = vcmp.eq.s32.totalorder %v533, 1
    %v536 = vsel %vm534, %v254, -1e+30
    %v537 = vsel %vm535, %v259, -1e+30
    %v538 = vsel %vm534, %v341, -1e+30
    %v539 = vsel %vm535, %v346, -1e+30
    %v540 = vsel %vm534, %v428, -1e+30
    %v541 = vsel %vm535, %v433, -1e+30
    %v542 = vsel %vm534, %v515, -1e+30
    %v543 = vsel %vm535, %v520, -1e+30
    %v544 = vsel %vm178, %v536, -inf
    %545 = vmax.xlane.f32.xlu0 %v544
    %v546 = vpop.xlane.xlu0 %545
    %v547 = vsel %vm178, %v537, -inf
    %548 = vmax.xlane.f32.xlu0 %v547
    %v549 = vpop.xlane.xlu0 %548
    %v550 = vsel %vm178, %v538, -inf
    %551 = vmax.xlane.f32.xlu0 %v550
    %v552 = vpop.xlane.xlu0 %551
    %v553 = vsel %vm178, %v539, -inf
    %554 = vmax.xlane.f32.xlu0 %v553
    %v555 = vpop.xlane.xlu0 %554
    %v556 = vsel %vm178, %v540, -inf
    %557 = vmax.xlane.f32.xlu0 %v556
    %v558 = vpop.xlane.xlu0 %557
    %v559 = vsel %vm178, %v541, -inf
    %560 = vmax.xlane.f32.xlu0 %v559
    %v561 = vpop.xlane.xlu0 %560
    %v562 = vsel %vm178, %v542, -inf
    %563 = vmax.xlane.f32.xlu0 %v562
    %v564 = vpop.xlane.xlu0 %563
    %v565 = vsel %vm178, %v543, -inf
    %566 = vmax.xlane.f32.xlu0 %v565
    %v567 = vpop.xlane.xlu0 %566
    %v568 = vsub.f32 %v536, %v546
    %v569 = vsub.f32 %v537, %v549
    %v570 = vsub.f32 %v538, %v552
    %v571 = vsub.f32 %v539, %v555
    %v572 = vsub.f32 %v540, %v558
    %v573 = vsub.f32 %v541, %v561
    %v574 = vsub.f32 %v542, %v564
    %v575 = vsub.f32 %v543, %v567
    %v576 = vmul.f32 %v568, 1.442695
    %v577 = vpow.pop %v576
    %v578 = vmul.f32 %v569, 1.442695
    %v579 = vpow.pop %v578
    %v580 = vmul.f32 %v570, 1.442695
    %v581 = vpow.pop %v580
    %v582 = vmul.f32 %v571, 1.442695
    %v583 = vpow.pop %v582
    %v584 = vmul.f32 %v572, 1.442695
    %v585 = vpow.pop %v584
    %v586 = vmul.f32 %v573, 1.442695
    %v587 = vpow.pop %v586
    %v588 = vmul.f32 %v574, 1.442695
    %v589 = vpow.pop %v588
    %v590 = vmul.f32 %v575, 1.442695
    %v591 = vpow.pop %v590
    %v592 = vsel %vm178, %v577, 0.0
    %593 = vadd.xlane.f32.xlu0 %v592
    %v594 = vpop.xlane.xlu0 %593
    %v595 = vsel %vm178, %v579, 0.0
    %596 = vadd.xlane.f32.xlu0 %v595
    %v597 = vpop.xlane.xlu0 %596
    %v598 = vsel %vm178, %v581, 0.0
    %599 = vadd.xlane.f32.xlu0 %v598
    %v600 = vpop.xlane.xlu0 %599
    %v601 = vsel %vm178, %v583, 0.0
    %602 = vadd.xlane.f32.xlu0 %v601
    %v603 = vpop.xlane.xlu0 %602
    %v604 = vsel %vm178, %v585, 0.0
    %605 = vadd.xlane.f32.xlu0 %v604
    %v606 = vpop.xlane.xlu0 %605
    %v607 = vsel %vm178, %v587, 0.0
    %608 = vadd.xlane.f32.xlu0 %v607
    %v609 = vpop.xlane.xlu0 %608
    %v610 = vsel %vm178, %v589, 0.0
    %611 = vadd.xlane.f32.xlu0 %v610
    %v612 = vpop.xlane.xlu0 %611
    %v613 = vsel %vm178, %v591, 0.0
    %614 = vadd.xlane.f32.xlu0 %v613
    %v615 = vpop.xlane.xlu0 %614
    %v616 = vrcp.pop %v594
    %v617 = vrcp.pop %v597
    %v618 = vrcp.pop %v600
    %v619 = vrcp.pop %v603
    %v620 = vrcp.pop %v606
    %v621 = vrcp.pop %v609
    %v622 = vrcp.pop %v612
    %v623 = vrcp.pop %v615
    %v624 = vmul.f32 %v577, %v616
    %v625 = vmul.f32 %v579, %v617
    %v626 = vmul.f32 %v581, %v618
    %v627 = vmul.f32 %v583, %v619
    %v628 = vmul.f32 %v585, %v620
    %v629 = vmul.f32 %v587, %v621
    %v630 = vmul.f32 %v589, %v622
    %v631 = vmul.f32 %v591, %v623
    %v632 = vadd.f32 %v624, %v626
    %v633 = vadd.f32 %v625, %v627
    %v634 = vadd.f32 %v632, %v628
    %v635 = vadd.f32 %v633, %v629
    %v636 = vadd.f32 %v634, %v630
    %v637 = vadd.f32 %v635, %v631
    %v638 = vmul.f32 %v636, 0.25
    %v639 = vmul.f32 %v637, 0.25
    %v641 = vsel %vm178, %v638, 0
    %v644 = vsel %vm178, %v639, 0
    %646 = vmatprep.subr.mxu0 0.0
    %647 = vmatpush1.msra.mxu0 %v62
    %648 = vmatprep.subr.mxu0 0.0
    %649 = vmatpush1.msra.mxu0 %v63
    %650 = vmatprep.subr.mxu0 0.0
    %651 = vmatpush1.msra.mxu0 0.0
    %652 = vmatprep.subr.mxu0 0.0
    %653 = vmatpush1.msra.mxu0 0.0
    %654 = vmatprep.subr.mxu0 0.0
    %655 = vmatpush1.msra.mxu0 0.0
    %656 = vmatprep.subr.mxu0 0.0
    %657 = vmatpush1.msra.mxu0 0.0
    %658 = vmatprep.subr.mxu0 0.0
    %659 = vmatpush1.msra.mxu0 0.0
    %660 = vmatprep.subr.mxu0 0.0
    %661 = vmatpush1.msra.mxu0 0.0
    %662 = vmatprep.subr.mxu0 0.0
    %663 = vmatpush1.msra.mxu0 0.0
    %664 = vmatprep.subr.mxu0 0.0
    %665 = vmatpush1.msra.mxu0 0.0
    %666 = vmatprep.subr.mxu0 0.0
    %667 = vmatpush1.msra.mxu0 0.0
    %668 = vmatprep.subr.mxu0 0.0
    %669 = vmatpush1.msra.mxu0 0.0
    %670 = vmatprep.subr.mxu0 0.0
    %671 = vmatpush1.msra.mxu0 0.0
    %672 = vmatprep.subr.mxu0 0.0
    %673 = vmatpush1.msra.mxu0 0.0
    %674 = vmatprep.subr.mxu0 0.0
    %675 = vmatpush1.msra.mxu0 0.0
    %676 = vmatprep.subr.mxu0 0.0
    %677 = vmatpush1.msra.mxu0 0.0
    %678 = vmatprep.subr.mxu0 0.0
    %679 = vmatpush1.msra.mxu0 0.0
    %680 = vmatprep.subr.mxu0 0.0
    %681 = vmatpush1.msra.mxu0 0.0
    %682 = vmatprep.subr.mxu0 0.0
    %683 = vmatpush1.msra.mxu0 0.0
    %684 = vmatprep.subr.mxu0 0.0
    %685 = vmatpush1.msra.mxu0 0.0
    %686 = vmatprep.subr.mxu0 0.0
    %687 = vmatpush1.msra.mxu0 0.0
    %688 = vmatprep.subr.mxu0 0.0
    %689 = vmatpush1.msra.mxu0 0.0
    %690 = vmatprep.subr.mxu0 0.0
    %691 = vmatpush1.msra.mxu0 0.0
    %692 = vmatprep.subr.mxu0 0.0
    %693 = vmatpush1.msra.mxu0 0.0
    %694 = vmatprep.subr.mxu0 0.0
    %695 = vmatpush1.msra.mxu0 0.0
    %696 = vmatprep.subr.mxu0 0.0
    %697 = vmatpush1.msra.mxu0 0.0
    %698 = vmatprep.subr.mxu0 0.0
    %699 = vmatpush1.msra.mxu0 0.0
    %700 = vmatprep.subr.mxu0 0.0
    %701 = vmatpush1.msra.mxu0 0.0
    %702 = vmatprep.subr.mxu0 0.0
    %703 = vmatpush1.msra.mxu0 0.0
    %704 = vmatprep.subr.mxu0 0.0
    %705 = vmatpush1.msra.mxu0 0.0
    %706 = vmatprep.subr.mxu0 0.0
    %707 = vmatpush1.msra.mxu0 0.0
    %708 = vmatprep.subr.mxu0 0.0
    %709 = vmatpush1.msra.mxu0 0.0
    %710 = vmatprep.mubr.f32.mxu0 0.0
    %711 = vmatmul.mubr.f32.gmra.mrb[0].mxu0 %v641
    %v712 = vpop.f32.mrb[0].mxu0
    %v713 = vadd.f32 0.0, %v712
    %v714 = vpop.f32.mrb[0].mxu0
    %715 = vmatprep.mubr.f32.mxu0 0.0
    %716 = vmatmul.mubr.f32.gmra.mrb[0].mxu0 %v644
    %v717 = vpop.f32.mrb[0].mxu0
    %v718 = vadd.f32 0.0, %v717
    %v719 = vpop.f32.mrb[0].mxu0
    %720 = vdwg.mxu0
    %v721 = vld [vmem:[#allocation7] sm:$0xff]
    %v722 = vld [vmem:[#allocation7 + $0x8] sm:$0xff]
    %v723 = vld [vmem:[#allocation7 + $0x10] sm:$0xff]
    %v724 = vld [vmem:[#allocation7 + $0x18] sm:$0xff]
    %v725 = vld [vmem:[#allocation7 + $0x20] sm:$0xff]
    %v726 = vld [vmem:[#allocation7 + $0x28] sm:$0xff]
    %v727 = vld [vmem:[#allocation7 + $0x30] sm:$0xff]
    %v728 = vld [vmem:[%s4] sm:$0x1]
    %v730 = vlaneseq
    %v731 = vshrl.u32 %v730, 7
    %v732 = vsub.s32 0, %v731
    %v733 = vrot.slane %v728, %v732
    %v736 = vsel %vm78, %v713, 0
    %v739 = vsel %vm78, %v718, 0
    %741 = vmatprep.subr.mxu0 0.0
    %742 = vmatpush1.msra.mxu0 %v721
    %743 = vmatprep.subr.mxu0 0.0
    %744 = vmatpush1.msra.mxu0 %v722
    %745 = vmatprep.subr.mxu0 0.0
    %746 = vmatpush1.msra.mxu0 %v723
    %747 = vmatprep.subr.mxu0 0.0
    %748 = vmatpush1.msra.mxu0 %v724
    %749 = vmatprep.subr.mxu0 0.0
    %750 = vmatpush1.msra.mxu0 %v725
    %751 = vmatprep.subr.mxu0 0.0
    %752 = vmatpush1.msra.mxu0 %v726
    %753 = vmatprep.subr.mxu0 0.0
    %754 = vmatpush1.msra.mxu0 %v727
    %755 = vmatprep.subr.mxu0 0.0
    %756 = vmatpush1.msra.mxu0 0.0
    %757 = vmatprep.subr.mxu0 0.0
    %758 = vmatpush1.msra.mxu0 0.0
    %759 = vmatprep.subr.mxu0 0.0
    %760 = vmatpush1.msra.mxu0 0.0
    %761 = vmatprep.subr.mxu0 0.0
    %762 = vmatpush1.msra.mxu0 0.0
    %763 = vmatprep.subr.mxu0 0.0
    %764 = vmatpush1.msra.mxu0 0.0
    %765 = vmatprep.subr.mxu0 0.0
    %766 = vmatpush1.msra.mxu0 0.0
    %767 = vmatprep.subr.mxu0 0.0
    %768 = vmatpush1.msra.mxu0 0.0
    %769 = vmatprep.subr.mxu0 0.0
    %770 = vmatpush1.msra.mxu0 0.0
    %771 = vmatprep.subr.mxu0 0.0
    %772 = vmatpush1.msra.mxu0 0.0
    %773 = vmatprep.subr.mxu0 0.0
    %774 = vmatpush1.msra.mxu0 0.0
    %775 = vmatprep.subr.mxu0 0.0
    %776 = vmatpush1.msra.mxu0 0.0
    %777 = vmatprep.subr.mxu0 0.0
    %778 = vmatpush1.msra.mxu0 0.0
    %779 = vmatprep.subr.mxu0 0.0
    %780 = vmatpush1.msra.mxu0 0.0
    %781 = vmatprep.subr.mxu0 0.0
    %782 = vmatpush1.msra.mxu0 0.0
    %783 = vmatprep.subr.mxu0 0.0
    %784 = vmatpush1.msra.mxu0 0.0
    %785 = vmatprep.subr.mxu0 0.0
    %786 = vmatpush1.msra.mxu0 0.0
    %787 = vmatprep.subr.mxu0 0.0
    %788 = vmatpush1.msra.mxu0 0.0
    %789 = vmatprep.subr.mxu0 0.0
    %790 = vmatpush1.msra.mxu0 0.0
    %791 = vmatprep.subr.mxu0 0.0
    %792 = vmatpush1.msra.mxu0 0.0
    %793 = vmatprep.subr.mxu0 0.0
    %794 = vmatpush1.msra.mxu0 0.0
    %795 = vmatprep.subr.mxu0 0.0
    %796 = vmatpush1.msra.mxu0 0.0
    %797 = vmatprep.subr.mxu0 0.0
    %798 = vmatpush1.msra.mxu0 0.0
    %799 = vmatprep.subr.mxu0 0.0
    %800 = vmatpush1.msra.mxu0 0.0
    %801 = vmatprep.subr.mxu0 0.0
    %802 = vmatpush1.msra.mxu0 0.0
    %803 = vmatprep.subr.mxu0 0.0
    %804 = vmatpush1.msra.mxu0 0.0
    %805 = vmatprep.mubr.f32.mxu0 0.0
    %806 = vmatmul.mubr.f32.gmra.mrb[0].mxu0 %v736
    %v807 = vpop.f32.mrb[0].mxu0
    %v808 = vadd.f32 %v733, %v807
    %v809 = vpop.f32.mrb[0].mxu0
    %810 = vmatprep.mubr.f32.mxu0 0.0
    %811 = vmatmul.mubr.f32.gmra.mrb[0].mxu0 %v739
    %v812 = vpop.f32.mrb[0].mxu0
    %v813 = vadd.f32 %v733, %v812
    %v814 = vpop.f32.mrb[0].mxu0
    %815 = vdwg.mxu0
    %816 = vst [vmem:[#allocation8] sm:$0xff] %v808
    %817 = vst [vmem:[#allocation8 + $0x8] sm:$0xff] %v813
    // Predicated region
    $region34: #{tpu_custom_call.1} parent=1 // pred_check
      _
    $region35: #{tpu_custom_call.1} parent=1 // pred_check_branch
      %819 = sbr.rel (0) target = $region37
    $region36: #{tpu_custom_call.1} parent=1 // pred_region
      %s821 = ssub.s32 256, 256
      %822 = vsyncadd [#allocation4], %s821
      %s823 = sshll.u32 [#allocation8], 4
      %s824 = int_to_ptr.vmem [resolvable:$true] %s823
      %829 = dma.vmem_to_hbm [thread:$0]  %s824, 256, %s5, [#allocation4], 128, 128, 8
    $region37: #{tpu_custom_call.1} parent=1 // pred_fallthru
      _
    // Predicated region
    $region38: #{tpu_custom_call.1} parent=1 // pred_check
      _
    $region39: #{tpu_custom_call.1} parent=1 // pred_check_branch
      %831 = sbr.rel (0) target = $region41
    $region40: #{tpu_custom_call.1} parent=1 // pred_region
      %832 = dma.done [#allocation4], 256
    $region41: #{tpu_custom_call.1} parent=1 // pred_fallthru
      _
    %833 = vsyncpa [#allocation3], 1
    %834 = vsyncpa [#allocation6], 1
    %835 = vsyncpa [#allocation4], 1

</llo_original>
